<compile_context>
chip_gen: v7x
topology: tpu7x:2x2x1
jax: 0.10.0
libtpu: 0.0.40
codegen_flags: <defaults>
</compile_context>

<pallas_src>
from functools import partial

import jax
import jax.numpy as jnp
import numpy as np
from jax.experimental import pallas as pl
from jax.experimental.pallas import tpu as pltpu

EPS = 1e-6
LANES = 128   # hardware lane width


def _round_up(x, m):
    return ((x + m - 1) // m) * m


def _sublane_group_sum(x, groups):
    """(groups*8, 128) -> (8, 128) via a pairwise tree of static, sublane-
    aligned slices (layout-preserving; pure VALU adds, short dep chain)."""
    parts = [x[g * 8:(g + 1) * 8, :] for g in range(groups)]
    while len(parts) > 1:
        nxt = []
        for i in range(0, len(parts) - 1, 2):
            nxt.append(parts[i] + parts[i + 1])
        if len(parts) % 2:
            nxt.append(parts[-1])
        parts = nxt
    return parts[0]


def _h2rbox_atss_kernel(pred_ref, tgt_ref, w_ref, out_ref, *, approx_recip):
    """Weighted per-term loss sums for one (r, 128) slab of boxes.

    pred_ref / tgt_ref : (5, r, 128) feature-major, lane-dense slabs
    w_ref              : (r, 128)
    out_ref            : (3, 8, 128) resident accumulator (one per core)
                         rows: [center, iou1 + |sin|, iou2 + |cos|]
    """
    r = pred_ref.shape[1]
    groups = r // 8
    f32 = jnp.float32

    @pl.when(pl.program_id(1) == 0)
    def _():
        out_ref[...] = jnp.zeros_like(out_ref)

    w = w_ref[...].astype(f32)

    xp = pred_ref[0].astype(f32)
    yp = pred_ref[1].astype(f32)
    wp = pred_ref[2].astype(f32)
    hp = pred_ref[3].astype(f32)
    ap = pred_ref[4].astype(f32)
    xt = tgt_ref[0].astype(f32)
    yt = tgt_ref[1].astype(f32)
    wt = tgt_ref[2].astype(f32)
    ht = tgt_ref[3].astype(f32)
    at = tgt_ref[4].astype(f32)

    # ---- center loss: L1 on (x, y), weight broadcast over both coords ----
    center = jnp.abs(xp - xt) + jnp.abs(yp - yt)

    # ---- shape loss: IoULoss (log mode) on axis-aligned boxes centred at 0.
    # The module's boxes are (-w, -h, w, h), i.e. areas carry a common factor
    # of 4 that cancels inside -log(iou); the EPS clamps are rescaled by 1/4
    # so degenerate (zero-area, padded) rows stay finite.
    area_sum = wp * hp + wt * ht          # shared between both IoU calls
    eps_union = EPS * 0.25

    def neg_log_iou(ow, oh):
        ov = jnp.maximum(ow, 0.0) * jnp.maximum(oh, 0.0)
        un = jnp.maximum(area_sum - ov, eps_union)
        ov = jnp.maximum(ov, un * EPS)    # == iou.clamp(min=EPS)
        if approx_recip:
            # 1 log + 1 EUP vrcp instead of 2 logs (v7x is EUP-bound here).
            return -jnp.log(ov * pl.reciprocal(un, approx=True))
        return jnp.log(un) - jnp.log(ov)  # exact: -log(max(ov/un, EPS))

    shape1 = neg_log_iou(jnp.minimum(wp, wt), jnp.minimum(hp, ht))
    shape2 = neg_log_iou(jnp.minimum(hp, wt), jnp.minimum(wp, ht))  # w/h swap

    # ---- angle loss: L1 on sin / cos of the angle difference vs. 0 ----
    da = ap - at
    abs_sin = jnp.abs(jnp.sin(da))
    abs_cos = jnp.abs(jnp.cos(da))

    def acc(idx, val):
        out_ref[idx] += _sublane_group_sum(val * w, groups)

    acc(0, center)
    acc(1, shape1 + abs_sin)
    acc(2, shape2 + abs_cos)


def _run_kernel(pred_fm, tgt_fm, w_fm, rows_per_step, num_cores,
                steps_per_core, approx_recip):
    """pred_fm/tgt_fm: (5, total_rows, 128); w_fm: (total_rows, 128)."""
    r = rows_per_step

    def in_map(c, i):
        return (0, c * steps_per_core + i, 0)

    def w_map(c, i):
        return (c * steps_per_core + i, 0)

    # Plain "parallel" does not shard across TensorCores; only CORE_PARALLEL
    # changes codegen.  Used only when num_cores > 1 (v7x).
    core_sem = pltpu.CORE_PARALLEL if num_cores > 1 else "arbitrary"

    return pl.pallas_call(
        partial(_h2rbox_atss_kernel, approx_recip=approx_recip),
        out_shape=jax.ShapeDtypeStruct((num_cores, 3, 8, LANES), jnp.float32),
        grid_spec=pltpu.PrefetchScalarGridSpec(
            num_scalar_prefetch=0,
            grid=(num_cores, steps_per_core),
            in_specs=[
                pl.BlockSpec((5, r, LANES), in_map),
                pl.BlockSpec((5, r, LANES), in_map),
                pl.BlockSpec((r, LANES), w_map),
            ],
            out_specs=pl.BlockSpec((None, 3, 8, LANES),
                                   lambda c, i: (c, 0, 0, 0)),
        ),
        compiler_params=pltpu.CompilerParams(
            dimension_semantics=(core_sem, "arbitrary")),
    )(pred_fm, tgt_fm, w_fm)


@partial(jax.jit, static_argnames=("reduction", "loss_weight", "approx_recip",
                                   "num_cores", "target_rows"))
def h2rbox_atss_loss(pred, target, weight, avg_factor=None, reduction="mean",
                     loss_weight=1.0, approx_recip=True, num_cores=1,
                     target_rows=512):
    """pred, target: (N, 5) [x, y, w, h, a]; weight: (N,). Returns scalar.

    Only 'mean' / 'sum' reductions are supported (the kernel reduces on-chip;
    the min() is taken on reduced sums, exactly like the module).
    num_cores=2 (with pltpu.CORE_PARALLEL) is intended for v7x only.
    """
    # TODO(synk): reduction='none' (per-sample loss output) is not supported
    # by this reduced-output kernel.
    assert reduction in ("mean", "sum")
    n = pred.shape[0]

    # Adaptive tiling: pad N to whole 128-lane rows, then pick the largest
    # rows_per_step <= target_rows (multiple of 8) that evenly covers the
    # (lightly padded) row count.  Padding overhead is at most a few rows.
    rows_raw = pl.cdiv(n, LANES)
    steps_total = _round_up(pl.cdiv(rows_raw, target_rows), num_cores)
    rows_per_step = _round_up(pl.cdiv(rows_raw, steps_total), 8)
    total_rows = steps_total * rows_per_step
    steps_per_core = steps_total // num_cores
    pad = total_rows * LANES - n

    def _canon(x):
        x = jnp.asarray(x)
        if x.dtype == jnp.bfloat16 or x.dtype == jnp.float32:
            return x                      # bf16 streamed as-is (half the bytes)
        return x.astype(jnp.float32)

    pred = _canon(pred)
    target = _canon(target)
    weight = _canon(weight)
    if pad:
        pred = jnp.pad(pred, ((0, pad), (0, 0)))
        target = jnp.pad(target, ((0, pad), (0, 0)))
        weight = jnp.pad(weight, ((0, pad),))   # zero weight kills padded terms

    # Feature-major, lane-dense slabs (5, total_rows, 128).  Under jit the
    # pad + transpose + reshape compile into one copy fusion.
    # TODO(synk): producers that already emit feature-major data should call
    # _run_kernel directly and skip this extra HBM pass.
    pred_fm = pred.T.reshape(5, total_rows, LANES)
    tgt_fm = target.T.reshape(5, total_rows, LANES)
    w_fm = weight.reshape(total_rows, LANES)

    partial_sums = _run_kernel(pred_fm, tgt_fm, w_fm, rows_per_step,
                               num_cores, steps_per_core, approx_recip)
    sums = jnp.sum(partial_sums, axis=(0, 2, 3))   # (3,) weighted sums

    if reduction == "sum":
        dc = ds = 1.0
    elif avg_factor is not None:
        dc = ds = avg_factor
    else:  # plain mean over weighted-loss elements (mmdet semantics)
        dc = 2.0 * n   # center loss has (N, 2) elements
        ds = 1.0 * n

    center_loss = sums[0] / dc
    shape_loss1 = sums[1] / ds   # iou(hbb_pred1) + |sin(da)| terms
    shape_loss2 = sums[2] / ds   # iou(hbb_pred2) + |cos(da)| terms
    return loss_weight * (center_loss + jnp.minimum(shape_loss1, shape_loss2))


def _reference(pred, target, weight, avg_factor, loss_weight=1.0):
    """Pure-JAX reference matching the PyTorch module (mean + avg_factor)."""
    pred = jnp.asarray(pred, jnp.float32)
    target = jnp.asarray(target, jnp.float32)
    weight = jnp.asarray(weight, jnp.float32)

    xy_l1 = jnp.abs(pred[:, :2] - target[:, :2]) * weight[:, None]
    center = xy_l1.sum() / avg_factor

    def iou_loss(pb, tb):
        ap = (pb[:, 2] - pb[:, 0]) * (pb[:, 3] - pb[:, 1])
        at = (tb[:, 2] - tb[:, 0]) * (tb[:, 3] - tb[:, 1])
        lt = jnp.maximum(pb[:, :2], tb[:, :2])
        rb = jnp.minimum(pb[:, 2:], tb[:, 2:])
        wh = jnp.clip(rb - lt, 0.0)
        ov = wh[:, 0] * wh[:, 1]
        iou = ov / jnp.maximum(ap + at - ov, EPS)
        return -jnp.log(jnp.maximum(iou, EPS))

    hbb_p1 = jnp.concatenate([-pred[:, 2:4], pred[:, 2:4]], -1)
    hbb_p2 = hbb_p1[:, jnp.array([1, 0, 3, 2])]
    hbb_t = jnp.concatenate([-target[:, 2:4], target[:, 2:4]], -1)
    da = pred[:, 4] - target[:, 4]

    s1 = (iou_loss(hbb_p1, hbb_t) * weight).sum() / avg_factor \
        + (jnp.abs(jnp.sin(da)) * weight).sum() / avg_factor
    s2 = (iou_loss(hbb_p2, hbb_t) * weight).sum() / avg_factor \
        + (jnp.abs(jnp.cos(da)) * weight).sum() / avg_factor
    return loss_weight * (center + jnp.minimum(s1, s2))


if __name__ == "__main__":
    key = jax.random.PRNGKey(0)
    k1, k2, k3 = jax.random.split(key, 3)

    N = 2000  # deliberately NOT a multiple of 128 -> exercises padding path
    pred = jax.random.normal(k1, (N, 5), jnp.float32)
    target = jax.random.normal(k2, (N, 5), jnp.float32)
    # keep box extents positive so IoU is well defined
    pred = pred.at[:, 2:4].set(jnp.abs(pred[:, 2:4]) + 0.1)
    target = target.at[:, 2:4].set(jnp.abs(target[:, 2:4]) + 0.1)
    weight = jax.random.uniform(k3, (N,), jnp.float32, 0.1, 1.0)
    avg_factor = float(jnp.sum(weight))

    ref = _reference(pred, target, weight, avg_factor)

    # 1) exact-log path, single adaptive tile (grid (1, 1)) -- tight check.
    loss = h2rbox_atss_loss(pred, target, weight, avg_factor=avg_factor,
                            approx_recip=False)
    loss = jax.block_until_ready(loss)
    np.testing.assert_allclose(np.asarray(loss), np.asarray(ref),
                               rtol=1e-4, atol=1e-4)

    # 2) default fast path (EUP approx reciprocal) -- loose consistency check.
    loss_fast = h2rbox_atss_loss(pred, target, weight, avg_factor=avg_factor)
    loss_fast = jax.block_until_ready(loss_fast)
    np.testing.assert_allclose(np.asarray(loss_fast), np.asarray(ref),
                               rtol=1e-2, atol=1e-2)

    # 3) small tiles -> multi-step resident accumulation path (grid (1, 2)).
    loss_small = h2rbox_atss_loss(pred, target, weight, avg_factor=avg_factor,
                                  approx_recip=False, target_rows=8)
    loss_small = jax.block_until_ready(loss_small)
    np.testing.assert_allclose(np.asarray(loss_small), np.asarray(ref),
                               rtol=1e-4, atol=1e-4)

    # 4) bf16 inputs: streamed as bf16, upcast in-kernel; compare against the
    #    reference evaluated on the same bf16-rounded values.
    pred_bf = pred.astype(jnp.bfloat16)
    tgt_bf = target.astype(jnp.bfloat16)
    w_bf = weight.astype(jnp.bfloat16)
    ref_bf = _reference(pred_bf.astype(jnp.float32), tgt_bf.astype(jnp.float32),
                        w_bf.astype(jnp.float32), avg_factor)
    loss_bf = h2rbox_atss_loss(pred_bf, tgt_bf, w_bf, avg_factor=avg_factor,
                               approx_recip=False)
    loss_bf = jax.block_until_ready(loss_bf)
    np.testing.assert_allclose(np.asarray(loss_bf), np.asarray(ref_bf),
                               rtol=1e-4, atol=1e-4)

    print("KERNEL_OK")
</pallas_src>

<mosaic_0001>
module attributes {stable_mosaic.version = 11 : i64} {
  func.func @_h2rbox_atss_kernel(%arg0: i32, %arg1: i32, %arg2: memref<5x16x128xf32, #tpu.memory_space<vmem>>, %arg3: memref<5x16x128xf32, #tpu.memory_space<vmem>>, %arg4: memref<16x128xf32, #tpu.memory_space<vmem>>, %arg5: memref<1x3x8x128xf32, #tpu.memory_space<vmem>>) attributes {dimension_semantics = [#tpu.dimension_semantics<arbitrary>, #tpu.dimension_semantics<arbitrary>], iteration_bounds = array<i64: 1, 1>, scalar_prefetch = 0 : i64, scratch_operands = 0 : i64, tpu.core_type = #tpu.core_type<tc>, window_params = [{transform_indices = @transform_0, window_bounds = array<i64: 5, 16, 128>}, {transform_indices = @transform_1, window_bounds = array<i64: 5, 16, 128>}, {transform_indices = @transform_2, window_bounds = array<i64: 16, 128>}, {transform_indices = @transform_3, window_bounds = array<i64: 1, 3, 8, 128>}]} {
    %c0_i32 = arith.constant 0 : i32
    %0 = arith.cmpi eq, %arg1, %c0_i32 : i32
    %1 = arith.extui %0 : i1 to i32
    %c0_i32_0 = arith.constant 0 : i32
    %2 = arith.cmpi ne, %1, %c0_i32_0 : i32
    scf.if %2 {
      %cst_59 = arith.constant 0.000000e+00 : f32
      %101 = vector.broadcast %cst_59 : f32 to vector<3x8x128xf32>
      %c0_60 = arith.constant 0 : index
      %c0_61 = arith.constant 0 : index
      %c0_62 = arith.constant 0 : index
      %c0_63 = arith.constant 0 : index
      %102 = vector.load %arg5[%c0_60, %c0_61, %c0_62, %c0_63] : memref<1x3x8x128xf32, #tpu.memory_space<vmem>>, vector<1x3x8x128xf32>
      %103 = vector.shape_cast %102 : vector<1x3x8x128xf32> to vector<3x8x128xf32>
      %104 = vector.shape_cast %101 : vector<3x8x128xf32> to vector<1x3x8x128xf32>
      tpu.vector_store %arg5[%c0_60, %c0_61, %c0_62, %c0_63], %104 {strides = array<i32>} : memref<1x3x8x128xf32, #tpu.memory_space<vmem>>, vector<1x3x8x128xf32>,
    } else {
    }
    %c0 = arith.constant 0 : index
    %c0_1 = arith.constant 0 : index
    %3 = vector.load %arg4[%c0, %c0_1] : memref<16x128xf32, #tpu.memory_space<vmem>>, vector<16x128xf32>
    %c0_2 = arith.constant 0 : index
    %c0_3 = arith.constant 0 : index
    %c0_4 = arith.constant 0 : index
    %4 = vector.load %arg2[%c0_2, %c0_3, %c0_4] : memref<5x16x128xf32, #tpu.memory_space<vmem>>, vector<1x16x128xf32>
    %5 = vector.shape_cast %4 : vector<1x16x128xf32> to vector<16x128xf32>
    %c1 = arith.constant 1 : index
    %c0_5 = arith.constant 0 : index
    %c0_6 = arith.constant 0 : index
    %6 = vector.load %arg2[%c1, %c0_5, %c0_6] : memref<5x16x128xf32, #tpu.memory_space<vmem>>, vector<1x16x128xf32>
    %7 = vector.shape_cast %6 : vector<1x16x128xf32> to vector<16x128xf32>
    %c2 = arith.constant 2 : index
    %c0_7 = arith.constant 0 : index
    %c0_8 = arith.constant 0 : index
    %8 = vector.load %arg2[%c2, %c0_7, %c0_8] : memref<5x16x128xf32, #tpu.memory_space<vmem>>, vector<1x16x128xf32>
    %9 = vector.shape_cast %8 : vector<1x16x128xf32> to vector<16x128xf32>
    %c3 = arith.constant 3 : index
    %c0_9 = arith.constant 0 : index
    %c0_10 = arith.constant 0 : index
    %10 = vector.load %arg2[%c3, %c0_9, %c0_10] : memref<5x16x128xf32, #tpu.memory_space<vmem>>, vector<1x16x128xf32>
    %11 = vector.shape_cast %10 : vector<1x16x128xf32> to vector<16x128xf32>
    %c4 = arith.constant 4 : index
    %c0_11 = arith.constant 0 : index
    %c0_12 = arith.constant 0 : index
    %12 = vector.load %arg2[%c4, %c0_11, %c0_12] : memref<5x16x128xf32, #tpu.memory_space<vmem>>, vector<1x16x128xf32>
    %13 = vector.shape_cast %12 : vector<1x16x128xf32> to vector<16x128xf32>
    %c0_13 = arith.constant 0 : index
    %c0_14 = arith.constant 0 : index
    %c0_15 = arith.constant 0 : index
    %14 = vector.load %arg3[%c0_13, %c0_14, %c0_15] : memref<5x16x128xf32, #tpu.memory_space<vmem>>, vector<1x16x128xf32>
    %15 = vector.shape_cast %14 : vector<1x16x128xf32> to vector<16x128xf32>
    %c1_16 = arith.constant 1 : index
    %c0_17 = arith.constant 0 : index
    %c0_18 = arith.constant 0 : index
    %16 = vector.load %arg3[%c1_16, %c0_17, %c0_18] : memref<5x16x128xf32, #tpu.memory_space<vmem>>, vector<1x16x128xf32>
    %17 = vector.shape_cast %16 : vector<1x16x128xf32> to vector<16x128xf32>
    %c2_19 = arith.constant 2 : index
    %c0_20 = arith.constant 0 : index
    %c0_21 = arith.constant 0 : index
    %18 = vector.load %arg3[%c2_19, %c0_20, %c0_21] : memref<5x16x128xf32, #tpu.memory_space<vmem>>, vector<1x16x128xf32>
    %19 = vector.shape_cast %18 : vector<1x16x128xf32> to vector<16x128xf32>
    %c3_22 = arith.constant 3 : index
    %c0_23 = arith.constant 0 : index
    %c0_24 = arith.constant 0 : index
    %20 = vector.load %arg3[%c3_22, %c0_23, %c0_24] : memref<5x16x128xf32, #tpu.memory_space<vmem>>, vector<1x16x128xf32>
    %21 = vector.shape_cast %20 : vector<1x16x128xf32> to vector<16x128xf32>
    %c4_25 = arith.constant 4 : index
    %c0_26 = arith.constant 0 : index
    %c0_27 = arith.constant 0 : index
    %22 = vector.load %arg3[%c4_25, %c0_26, %c0_27] : memref<5x16x128xf32, #tpu.memory_space<vmem>>, vector<1x16x128xf32>
    %23 = vector.shape_cast %22 : vector<1x16x128xf32> to vector<16x128xf32>
    %24 = arith.subf %5, %15 : vector<16x128xf32>
    %25 = math.absf %24 : vector<16x128xf32>
    %26 = arith.subf %7, %17 : vector<16x128xf32>
    %27 = math.absf %26 : vector<16x128xf32>
    %28 = arith.addf %25, %27 : vector<16x128xf32>
    %29 = arith.mulf %9, %11 : vector<16x128xf32>
    %30 = arith.mulf %19, %21 : vector<16x128xf32>
    %31 = arith.addf %29, %30 : vector<16x128xf32>
    %32 = arith.minimumf %9, %19 : vector<16x128xf32>
    %33 = arith.minimumf %11, %21 : vector<16x128xf32>
    %cst = arith.constant 0.000000e+00 : f32
    %34 = vector.broadcast %cst : f32 to vector<16x128xf32>
    %35 = arith.maximumf %32, %34 : vector<16x128xf32>
    %cst_28 = arith.constant 0.000000e+00 : f32
    %36 = vector.broadcast %cst_28 : f32 to vector<16x128xf32>
    %37 = arith.maximumf %33, %36 : vector<16x128xf32>
    %38 = arith.mulf %35, %37 : vector<16x128xf32>
    %39 = arith.subf %31, %38 : vector<16x128xf32>
    %cst_29 = arith.constant 2.500000e-07 : f32
    %40 = vector.broadcast %cst_29 : f32 to vector<16x128xf32>
    %41 = arith.maximumf %39, %40 : vector<16x128xf32>
    %cst_30 = arith.constant 9.99999997E-7 : f32
    %42 = vector.broadcast %cst_30 : f32 to vector<16x128xf32>
    %43 = arith.mulf %41, %42 : vector<16x128xf32>
    %44 = arith.maximumf %38, %43 : vector<16x128xf32>
    %45 = math.log %41 : vector<16x128xf32>
    %46 = math.log %44 : vector<16x128xf32>
    %47 = arith.subf %45, %46 : vector<16x128xf32>
    %48 = arith.minimumf %11, %19 : vector<16x128xf32>
    %49 = arith.minimumf %9, %21 : vector<16x128xf32>
    %cst_31 = arith.constant 0.000000e+00 : f32
    %50 = vector.broadcast %cst_31 : f32 to vector<16x128xf32>
    %51 = arith.maximumf %48, %50 : vector<16x128xf32>
    %cst_32 = arith.constant 0.000000e+00 : f32
    %52 = vector.broadcast %cst_32 : f32 to vector<16x128xf32>
    %53 = arith.maximumf %49, %52 : vector<16x128xf32>
    %54 = arith.mulf %51, %53 : vector<16x128xf32>
    %55 = arith.subf %31, %54 : vector<16x128xf32>
    %cst_33 = arith.constant 2.500000e-07 : f32
    %56 = vector.broadcast %cst_33 : f32 to vector<16x128xf32>
    %57 = arith.maximumf %55, %56 : vector<16x128xf32>
    %cst_34 = arith.constant 9.99999997E-7 : f32
    %58 = vector.broadcast %cst_34 : f32 to vector<16x128xf32>
    %59 = arith.mulf %57, %58 : vector<16x128xf32>
    %60 = arith.maximumf %54, %59 : vector<16x128xf32>
    %61 = math.log %57 : vector<16x128xf32>
    %62 = math.log %60 : vector<16x128xf32>
    %63 = arith.subf %61, %62 : vector<16x128xf32>
    %64 = arith.subf %13, %23 : vector<16x128xf32>
    %65 = math.sin %64 : vector<16x128xf32>
    %66 = math.absf %65 : vector<16x128xf32>
    %67 = math.cos %64 : vector<16x128xf32>
    %68 = math.absf %67 : vector<16x128xf32>
    %c0_35 = arith.constant 0 : index
    %c0_36 = arith.constant 0 : index
    %c0_37 = arith.constant 0 : index
    %c0_38 = arith.constant 0 : index
    %69 = vector.load %arg5[%c0_35, %c0_36, %c0_37, %c0_38] : memref<1x3x8x128xf32, #tpu.memory_space<vmem>>, vector<1x1x8x128xf32>
    %70 = vector.shape_cast %69 : vector<1x1x8x128xf32> to vector<8x128xf32>
    %71 = arith.mulf %28, %3 : vector<16x128xf32>
    %72 = vector.extract_strided_slice %71 {offsets = [0, 0], sizes = [8, 128], strides = [1, 1]} : vector<16x128xf32> to vector<8x128xf32>
    %73 = vector.extract_strided_slice %71 {offsets = [8, 0], sizes = [8, 128], strides = [1, 1]} : vector<16x128xf32> to vector<8x128xf32>
    %74 = arith.addf %72, %73 : vector<8x128xf32>
    %75 = arith.addf %70, %74 : vector<8x128xf32>
    %c0_39 = arith.constant 0 : index
    %c0_40 = arith.constant 0 : index
    %c0_41 = arith.constant 0 : index
    %c0_42 = arith.constant 0 : index
    %76 = vector.load %arg5[%c0_39, %c0_40, %c0_41, %c0_42] : memref<1x3x8x128xf32, #tpu.memory_space<vmem>>, vector<1x1x8x128xf32>
    %77 = vector.shape_cast %76 : vector<1x1x8x128xf32> to vector<8x128xf32>
    %78 = vector.shape_cast %75 : vector<8x128xf32> to vector<1x1x8x128xf32>
    tpu.vector_store %arg5[%c0_39, %c0_40, %c0_41, %c0_42], %78 {strides = array<i32>} : memref<1x3x8x128xf32, #tpu.memory_space<vmem>>, vector<1x1x8x128xf32>,
    %79 = arith.addf %47, %66 : vector<16x128xf32>
    %c0_43 = arith.constant 0 : index
    %c1_44 = arith.constant 1 : index
    %c0_45 = arith.constant 0 : index
    %c0_46 = arith.constant 0 : index
    %80 = vector.load %arg5[%c0_43, %c1_44, %c0_45, %c0_46] : memref<1x3x8x128xf32, #tpu.memory_space<vmem>>, vector<1x1x8x128xf32>
    %81 = vector.shape_cast %80 : vector<1x1x8x128xf32> to vector<8x128xf32>
    %82 = arith.mulf %79, %3 : vector<16x128xf32>
    %83 = vector.extract_strided_slice %82 {offsets = [0, 0], sizes = [8, 128], strides = [1, 1]} : vector<16x128xf32> to vector<8x128xf32>
    %84 = vector.extract_strided_slice %82 {offsets = [8, 0], sizes = [8, 128], strides = [1, 1]} : vector<16x128xf32> to vector<8x128xf32>
    %85 = arith.addf %83, %84 : vector<8x128xf32>
    %86 = arith.addf %81, %85 : vector<8x128xf32>
    %c0_47 = arith.constant 0 : index
    %c1_48 = arith.constant 1 : index
    %c0_49 = arith.constant 0 : index
    %c0_50 = arith.constant 0 : index
    %87 = vector.load %arg5[%c0_47, %c1_48, %c0_49, %c0_50] : memref<1x3x8x128xf32, #tpu.memory_space<vmem>>, vector<1x1x8x128xf32>
    %88 = vector.shape_cast %87 : vector<1x1x8x128xf32> to vector<8x128xf32>
    %89 = vector.shape_cast %86 : vector<8x128xf32> to vector<1x1x8x128xf32>
    tpu.vector_store %arg5[%c0_47, %c1_48, %c0_49, %c0_50], %89 {strides = array<i32>} : memref<1x3x8x128xf32, #tpu.memory_space<vmem>>, vector<1x1x8x128xf32>,
    %90 = arith.addf %63, %68 : vector<16x128xf32>
    %c0_51 = arith.constant 0 : index
    %c2_52 = arith.constant 2 : index
    %c0_53 = arith.constant 0 : index
    %c0_54 = arith.constant 0 : index
    %91 = vector.load %arg5[%c0_51, %c2_52, %c0_53, %c0_54] : memref<1x3x8x128xf32, #tpu.memory_space<vmem>>, vector<1x1x8x128xf32>
    %92 = vector.shape_cast %91 : vector<1x1x8x128xf32> to vector<8x128xf32>
    %93 = arith.mulf %90, %3 : vector<16x128xf32>
    %94 = vector.extract_strided_slice %93 {offsets = [0, 0], sizes = [8, 128], strides = [1, 1]} : vector<16x128xf32> to vector<8x128xf32>
    %95 = vector.extract_strided_slice %93 {offsets = [8, 0], sizes = [8, 128], strides = [1, 1]} : vector<16x128xf32> to vector<8x128xf32>
    %96 = arith.addf %94, %95 : vector<8x128xf32>
    %97 = arith.addf %92, %96 : vector<8x128xf32>
    %c0_55 = arith.constant 0 : index
    %c2_56 = arith.constant 2 : index
    %c0_57 = arith.constant 0 : index
    %c0_58 = arith.constant 0 : index
    %98 = vector.load %arg5[%c0_55, %c2_56, %c0_57, %c0_58] : memref<1x3x8x128xf32, #tpu.memory_space<vmem>>, vector<1x1x8x128xf32>
    %99 = vector.shape_cast %98 : vector<1x1x8x128xf32> to vector<8x128xf32>
    %100 = vector.shape_cast %97 : vector<8x128xf32> to vector<1x1x8x128xf32>
    tpu.vector_store %arg5[%c0_55, %c2_56, %c0_57, %c0_58], %100 {strides = array<i32>} : memref<1x3x8x128xf32, #tpu.memory_space<vmem>>, vector<1x1x8x128xf32>,
    return
  }
  func.func @transform_0(%arg0: i32, %arg1: i32) -> (i32, i32, i32) {
    %c1_i32 = arith.constant 1 : i32
    %0 = arith.muli %arg0, %c1_i32 : i32
    %1 = arith.addi %0, %arg1 : i32
    %c0_i32 = arith.constant 0 : i32
    %c0_i32_0 = arith.constant 0 : i32
    %c0_i32_1 = arith.constant 0 : i32
    return %c0_i32, %1, %c0_i32_0 : i32, i32, i32
  }
  func.func @transform_1(%arg0: i32, %arg1: i32) -> (i32, i32, i32) {
    %c1_i32 = arith.constant 1 : i32
    %0 = arith.muli %arg0, %c1_i32 : i32
    %1 = arith.addi %0, %arg1 : i32
    %c0_i32 = arith.constant 0 : i32
    %c0_i32_0 = arith.constant 0 : i32
    %c0_i32_1 = arith.constant 0 : i32
    return %c0_i32, %1, %c0_i32_0 : i32, i32, i32
  }
  func.func @transform_2(%arg0: i32, %arg1: i32) -> (i32, i32) {
    %c1_i32 = arith.constant 1 : i32
    %0 = arith.muli %arg0, %c1_i32 : i32
    %1 = arith.addi %0, %arg1 : i32
    %c0_i32 = arith.constant 0 : i32
    %c0_i32_0 = arith.constant 0 : i32
    return %1, %c0_i32 : i32, i32
  }
  func.func @transform_3(%arg0: i32, %arg1: i32) -> (i32, i32, i32, i32) {
    %c0_i32 = arith.constant 0 : i32
    %c0_i32_0 = arith.constant 0 : i32
    %c0_i32_1 = arith.constant 0 : i32
    %c0_i32_2 = arith.constant 0 : i32
    return %arg0, %c0_i32, %c0_i32_0, %c0_i32_1 : i32, i32, i32, i32
  }
}

</mosaic_0001>

<llo_original>
// kernel: h2rbox_atss_loss.1
$region0: #{h2rbox_atss_loss.1}
  #allocation0 [shape = 'u32[]', space=smem, size = 0x4, offset = 0x4, fixed_abs, tag = 'smem constant byte address 0x4 - core index']
  #allocation1 [shape = 'u32[144,128]{1,0:T(1,128)}', space=vmem, size = 0x12000, scoped, tag = 'internal scratch']
  %s0 = inlined_call_operand.vmem [shape: f32[5,16,128], index: 0, kind: input, shape index: {}]
  %s1 = inlined_call_operand.vmem [shape: f32[5,16,128], index: 1, kind: input, shape index: {}]
  %s2 = inlined_call_operand.vmem [shape: f32[16,128], index: 2, kind: input, shape index: {}]
  %s3 = inlined_call_operand.vmem [shape: f32[1,3,8,128], index: 3, kind: output, shape index: {}]
  %s4 = sld [smem:[#allocation0]]
  $region26: #{h2rbox_atss_loss.1} parent=0
    _
  %s6 = ssub.s32 1, %s4
  %s7 = scalar_select 0, %s6, %s4
  // Predicated region
  $region2: #{h2rbox_atss_loss.1} parent=0 // pred_check
    _
  $region3: #{h2rbox_atss_loss.1} parent=0 // pred_check_branch
    %9 = sbr.rel (0) target = $region5
  $region4: #{h2rbox_atss_loss.1} parent=0 // pred_region
    %s10 = sadd.s32 0, 0
    %s11 = smul.u32 2, %s10
    %p12 = scmp.lt.s32.totalorder %s11, 1
    %s13 = scalar_select %p12, %s11, 1
    %s14 = smul.addr %s13, 8
    %s15 = scalar_lea.vmem %s0, %s14
    %s16 = sadd.s32 0, 0
    %s17 = smul.u32 2, %s16
  $region5: #{h2rbox_atss_loss.1} parent=0 // pred_fallthru
    _
  // Predicated region
  $region6: #{h2rbox_atss_loss.1} parent=0 // pred_check
    _
  $region7: #{h2rbox_atss_loss.1} parent=0 // pred_check_branch
    %19 = sbr.rel (0) target = $region9
  $region8: #{h2rbox_atss_loss.1} parent=0 // pred_region
    %s20 = sadd.s32 0, 0
    %s21 = smul.u32 2, %s20
    %p22 = scmp.lt.s32.totalorder %s21, 1
    %s23 = scalar_select %p22, %s21, 1
    %s24 = smul.addr %s23, 8
    %s25 = scalar_lea.vmem %s1, %s24
    %s26 = sadd.s32 0, 0
    %s27 = smul.u32 2, %s26
  $region9: #{h2rbox_atss_loss.1} parent=0 // pred_fallthru
    _
  // Predicated region
  $region10: #{h2rbox_atss_loss.1} parent=0 // pred_check
    _
  $region11: #{h2rbox_atss_loss.1} parent=0 // pred_check_branch
    %29 = sbr.rel (0) target = $region13
  $region12: #{h2rbox_atss_loss.1} parent=0 // pred_region
    %s30 = sadd.s32 0, 0
    %s31 = smul.u32 2, %s30
    %p32 = scmp.lt.s32.totalorder %s31, 1
    %s33 = scalar_select %p32, %s31, 1
    %s34 = smul.addr %s33, 8
    %s35 = scalar_lea.vmem %s2, %s34
    %s36 = sadd.s32 0, 0
    %s37 = smul.u32 2, %s36
  $region13: #{h2rbox_atss_loss.1} parent=0 // pred_fallthru
    _
  %s38 = sadd.s32 0, 0
  %s39 = smul.u32 2, %s38
  %p40 = scmp.lt.s32.totalorder %s39, 1
  %s41 = scalar_select %p40, %s39, 1
  %s42 = smul.addr %s41, 8
  %s43 = scalar_lea.vmem %s0, %s42
  %s44 = sadd.s32 0, 0
  %s45 = smul.u32 2, %s44
  %p46 = scmp.lt.s32.totalorder %s45, 1
  %s47 = scalar_select %p46, %s45, 1
  %s48 = smul.addr %s47, 8
  %s49 = scalar_lea.vmem %s1, %s48
  %s50 = sadd.s32 0, 0
  %s51 = smul.u32 2, %s50
  %p52 = scmp.lt.s32.totalorder %s51, 1
  %s53 = scalar_select %p52, %s51, 1
  %s54 = smul.addr %s53, 8
  %s55 = scalar_lea.vmem %s2, %s54
  %s56 = sadd.s32 0, 0
  %s57 = smul.u32 2, %s56
  %p58 = scmp.lt.s32.totalorder %s57, 1
  %s59 = scalar_select %p58, %s57, 1
  %s60 = smul.addr %s59, 8
  %s61 = scalar_lea.vmem %s0, %s60
  %s62 = sadd.s32 0, 0
  %s63 = smul.u32 2, %s62
  %s64 = sadd.s32 0, 0
  %s65 = smul.u32 2, %s64
  %p66 = scmp.lt.s32.totalorder %s65, 1
  %s67 = scalar_select %p66, %s65, 1
  %s68 = smul.addr %s67, 8
  %s69 = scalar_lea.vmem %s1, %s68
  %s70 = sadd.s32 0, 0
  %s71 = smul.u32 2, %s70
  %s72 = sadd.s32 0, 0
  %s73 = smul.u32 2, %s72
  %p74 = scmp.lt.s32.totalorder %s73, 1
  %s75 = scalar_select %p74, %s73, 1
  %s76 = smul.addr %s75, 8
  %s77 = scalar_lea.vmem %s2, %s76
  %s78 = sadd.s32 0, 0
  %s79 = smul.u32 2, %s78
  %p80 = scmp.eq.s32.totalorder 0, 0
  // Predicated region
  $region14: #{h2rbox_atss_loss.1} parent=0 // pred_check
    %p81 = pneg %p80
  $region15: #{h2rbox_atss_loss.1} parent=0 // pred_check_branch
    %83 = sbr.rel (%p81) target = $region17
  $region16: #{h2rbox_atss_loss.1} parent=0 // pred_region
    %84 = vst [vmem:[%s3] sm:$0xff] 0.0
    %85 = vst [vmem:[%s3 + $0x8] sm:$0xff] 0.0
    %86 = vst [vmem:[%s3 + $0x10] sm:$0xff] 0.0
  $region17: #{h2rbox_atss_loss.1} parent=0 // pred_fallthru
    _
  %v87 = vld [vmem:[%s77] sm:$0xff]
  %v88 = vld [vmem:[%s77 + $0x8] sm:$0xff]
  %v89 = vld [vmem:[%s61] sm:$0xff]
  %v90 = vld [vmem:[%s61 + $0x8] sm:$0xff]
  %s91 = scalar_lea.vmem %s61, 16
  %v92 = vld [vmem:[%s91] sm:$0xff]
  %v93 = vld [vmem:[%s91 + $0x8] sm:$0xff]
  %s94 = scalar_lea.vmem %s61, 32
  %v95 = vld [vmem:[%s94] sm:$0xff]
  %v96 = vld [vmem:[%s94 + $0x8] sm:$0xff]
  %s97 = scalar_lea.vmem %s61, 48
  %v98 = vld [vmem:[%s97] sm:$0xff]
  %v99 = vld [vmem:[%s97 + $0x8] sm:$0xff]
  %s100 = scalar_lea.vmem %s61, 64
  %v101 = vld [vmem:[%s100] sm:$0xff]
  %v102 = vld [vmem:[%s100 + $0x8] sm:$0xff]
  %v103 = vld [vmem:[%s69] sm:$0xff]
  %v104 = vld [vmem:[%s69 + $0x8] sm:$0xff]
  %s105 = scalar_lea.vmem %s69, 16
  %v106 = vld [vmem:[%s105] sm:$0xff]
  %v107 = vld [vmem:[%s105 + $0x8] sm:$0xff]
  %s108 = scalar_lea.vmem %s69, 32
  %v109 = vld [vmem:[%s108] sm:$0xff]
  %v110 = vld [vmem:[%s108 + $0x8] sm:$0xff]
  %s111 = scalar_lea.vmem %s69, 48
  %v112 = vld [vmem:[%s111] sm:$0xff]
  %v113 = vld [vmem:[%s111 + $0x8] sm:$0xff]
  %s114 = scalar_lea.vmem %s69, 64
  %v115 = vld [vmem:[%s114] sm:$0xff]
  %v116 = vld [vmem:[%s114 + $0x8] sm:$0xff]
  %v117 = vsub.f32 %v89, %v103
  %v118 = vsub.f32 %v90, %v104
  %v119 = vand.u32 2147483647, %v117
  %v120 = vand.u32 2147483647, %v118
  %v121 = vsub.f32 %v92, %v106
  %v122 = vsub.f32 %v93, %v107
  %v123 = vand.u32 2147483647, %v121
  %v124 = vand.u32 2147483647, %v122
  %v125 = vadd.f32 %v119, %v123
  %v126 = vadd.f32 %v120, %v124
  %v127 = vmul.f32 %v95, %v98
  %v128 = vmul.f32 %v96, %v99
  %v129 = vmul.f32 %v109, %v112
  %v130 = vmul.f32 %v110, %v113
  %v131 = vadd.f32 %v127, %v129
  %v132 = vadd.f32 %v128, %v130
  %v133 = vmin.f32 %v95, %v109
  %v134 = vmin.f32 %v96, %v110
  %v135 = vmin.f32 %v98, %v112
  %v136 = vmin.f32 %v99, %v113
  %v137 = vmax.f32 %v133, 0.0
  %v138 = vmax.f32 %v134, 0.0
  %v139 = vmax.f32 %v135, 0.0
  %v140 = vmax.f32 %v136, 0.0
  %v141 = vmul.f32 %v137, %v139
  %v142 = vmul.f32 %v138, %v140
  %v143 = vsub.f32 %v131, %v141
  %v144 = vsub.f32 %v132, %v142
  %v145 = vmax.f32 %v143, 2.5e-07
  %v146 = vmax.f32 %v144, 2.5e-07
  %v147 = vmul.f32 %v145, 1e-06
  %v148 = vmul.f32 %v146, 1e-06
  %v149 = vmax.f32 %v141, %v147
  %v150 = vmax.f32 %v142, %v148
  %v151 = vlog2.pop %v145
  %v152 = vmul.f32 %v151, 0.6931472
  %v153 = vlog2.pop %v146
  %v154 = vmul.f32 %v153, 0.6931472
  %v155 = vlog2.pop %v149
  %v156 = vmul.f32 %v155, 0.6931472
  %v157 = vlog2.pop %v150
  %v158 = vmul.f32 %v157, 0.6931472
  %v159 = vsub.f32 %v152, %v156
  %v160 = vsub.f32 %v154, %v158
  %v161 = vmin.f32 %v98, %v109
  %v162 = vmin.f32 %v99, %v110
  %v163 = vmin.f32 %v95, %v112
  %v164 = vmin.f32 %v96, %v113
  %v165 = vmax.f32 %v161, 0.0
  %v166 = vmax.f32 %v162, 0.0
  %v167 = vmax.f32 %v163, 0.0
  %v168 = vmax.f32 %v164, 0.0
  %v169 = vmul.f32 %v165, %v167
  %v170 = vmul.f32 %v166, %v168
  %v171 = vsub.f32 %v131, %v169
  %v172 = vsub.f32 %v132, %v170
  %v173 = vmax.f32 %v171, 2.5e-07
  %v174 = vmax.f32 %v172, 2.5e-07
  %v175 = vmul.f32 %v173, 1e-06
  %v176 = vmul.f32 %v174, 1e-06
  %v177 = vmax.f32 %v169, %v175
  %v178 = vmax.f32 %v170, %v176
  %v179 = vlog2.pop %v173
  %v180 = vmul.f32 %v179, 0.6931472
  %v181 = vlog2.pop %v174
  %v182 = vmul.f32 %v181, 0.6931472
  %v183 = vlog2.pop %v177
  %v184 = vmul.f32 %v183, 0.6931472
  %v185 = vlog2.pop %v178
  %v186 = vmul.f32 %v185, 0.6931472
  %v187 = vsub.f32 %v180, %v184
  %v188 = vsub.f32 %v182, %v186
  %v189 = vsub.f32 %v101, %v115
  %v190 = vsub.f32 %v102, %v116
  %v191 = vand.u32 2147483647, %v189
  %vm192 = vcmp.le.f32.partialorder %v191, 0.7853982
  %vm193 = vcmp.lt.s32.totalorder %v189, 0
  %v194 = vand.u32 %v189, 2139095040
  %v195 = vshrl.u32 %v194, 23
  %v196 = vsub.s32 %v195, 127
  %v197 = vand.u32 2147483647, %v189
  %v198 = vand.u32 %v197, 8388607
  %v199 = vor.u32 %v198, 8388608
  %v200 = vsub.s32 0, %v199
  %v201 = vadd.s32 %v196, 1
  %vm202 = vcmp.gt.s32.totalorder %v201, 0
  %v203 = vsel %vm202, %v201, 0
  %v204 = vshrl.u32 %v203, 5
  %v205 = vand.u32 %v203, 31
  %v206 = vsub.s32 32, %v205
  %v207 = vshrl.u32 683565275, %v206
  %v208 = vshll.u32 683565275, %v205
  %v209 = vshrl.u32 2475754826, %v206
  %v210 = vor.u32 %v208, %v209
  %v211 = vshll.u32 2475754826, %v205
  %v212 = vshrl.u32 2131351028, %v206
  %v213 = vor.u32 %v211, %v212
  %v214 = vshll.u32 2131351028, %v205
  %v215 = vshrl.u32 2102212464, %v206
  %v216 = vor.u32 %v214, %v215
  %v217 = vshll.u32 2102212464, %v205
  %v218 = vshrl.u32 920167782, %v206
  %v219 = vor.u32 %v217, %v218
  %v220 = vshll.u32 920167782, %v205
  %v221 = vshrl.u32 1326507024, %v206
  %v222 = vor.u32 %v220, %v221
  %vm223 = vcmp.lt.s32.totalorder %v204, 1
  %vm224 = vcmp.lt.s32.totalorder %v204, 2
  %vm225 = vcmp.lt.s32.totalorder %v204, 3
  %vm226 = vcmp.lt.s32.totalorder %v204, 4
  %v227 = vsel %vm223, %v207, %v210
  %v228 = vsel %vm226, %v216, 2102212464
  %v229 = vsel %vm225, %v213, %v228
  %v230 = vsel %vm224, %v227, %v229
  %v231 = vsel %vm223, %v210, %v213
  %v232 = vsel %vm226, %v219, 920167782
  %v233 = vsel %vm225, %v216, %v232
  %v234 = vsel %vm224, %v231, %v233
  %v235 = vsel %vm223, %v213, %v216
  %v236 = vsel %vm226, %v222, 1326507024
  %v237 = vsel %vm225, %v219, %v236
  %v238 = vsel %vm224, %v235, %v237
  %v239 = vshll.u32 %v199, 8
  %v240 = vmul.u32.u64.compose %v239, %v238
  %v241 = vextract.low.u32 %v240
  %v242 = vextract.high.u32 %v240
  %v243 = vmul.u32.u64.compose %v239, %v234
  %v244 = vextract.low.u32 %v243
  %v245 = vextract.high.u32 %v243
  %v246 = vmul.u32 %v239, %v230
  %v247 = vadd.s32 %v242, %v244
  %vm248 = vc.u32 %v242, %v244
  %v249 = vadd.s32 %v245, 1
  %v250 = vsel %vm248, %v249, %v245
  %v251 = vadd.s32 %v246, %v250
  %v252 = vadd.s32 %v251, 536870912
  %v253 = vshrl.u32 %v252, 30
  %v254 = vshll.u32 %v253, 30
  %v255 = vsub.s32 %v251, %v254
  %vm256 = vcmp.lt.s32.totalorder %v255, 0
  %v257 = vsub.s32 0, %v255
  %v258 = vsel %vm256, %v257, %v255
  %v259 = vclz %v258
  %v260 = vsub.s32 %v259, 2
  %vm261 = vcmp.gt.s32.totalorder 0, %v260
  %v262 = vsel %vm261, 0, %v260
  %v263 = vsub.s32 32, %v262
  %v264 = vshll.u32 %v255, %v262
  %v265 = vshrl.u32 %v247, %v263
  %v266 = vor.u32 %v264, %v265
  %v267 = vsub.s32 4294967266, %v262
  %v268 = vadd.s32 %v267, 127
  %v269 = vshll.u32 %v268, 23
  %v270 = vor.u32 4788187, %v269
  %v271 = vand.u32 2147483647, %v270
  %v273 = vcvt.s32.f32 %v266
  %v274 = vmul.f32 %v273, %v271
  %v275 = vxor.u32 %v274, 2147483648
  %v276 = vsel %vm193, %v275, %v274
  %v277 = vsub.s32 4, %v253
  %v278 = vsel %vm193, %v277, %v253
  %v279 = vsel %vm192, %v189, %v276
  %v280 = vsel %vm192, 0, %v278
  %v281 = vcosq.f32.pop %v279
  %v282 = vsinq.f32.pop %v279
  %vm283 = vweird.f32 %v189
  %v284 = vadd.s32 %v280, 3
  %v285 = vand.u32 %v284, 3
  %vm286 = vcmp.lt.s32.totalorder %v285, 2
  %vm287 = vcmp.eq.s32.totalorder %v285, 0
  %v288 = vxor.u32 %v282, 2147483648
  %v289 = vsel %vm287, %v281, %v288
  %vm290 = vcmp.eq.s32.totalorder %v285, 2
  %v291 = vxor.u32 %v281, 2147483648
  %v292 = vsel %vm290, %v291, %v282
  %v293 = vsel %vm286, %v289, %v292
  %v294 = vsel %vm283, nan, %v293
  %v295 = vand.u32 2147483647, %v190
  %vm296 = vcmp.le.f32.partialorder %v295, 0.7853982
  %vm297 = vcmp.lt.s32.totalorder %v190, 0
  %v298 = vand.u32 %v190, 2139095040
  %v299 = vshrl.u32 %v298, 23
  %v300 = vsub.s32 %v299, 127
  %v301 = vand.u32 2147483647, %v190
  %v302 = vand.u32 %v301, 8388607
  %v303 = vor.u32 %v302, 8388608
  %v304 = vsub.s32 0, %v303
  %v305 = vadd.s32 %v300, 1
  %vm306 = vcmp.gt.s32.totalorder %v305, 0
  %v307 = vsel %vm306, %v305, 0
  %v308 = vshrl.u32 %v307, 5
  %v309 = vand.u32 %v307, 31
  %v310 = vsub.s32 32, %v309
  %v311 = vshrl.u32 683565275, %v310
  %v312 = vshll.u32 683565275, %v309
  %v313 = vshrl.u32 2475754826, %v310
  %v314 = vor.u32 %v312, %v313
  %v315 = vshll.u32 2475754826, %v309
  %v316 = vshrl.u32 2131351028, %v310
  %v317 = vor.u32 %v315, %v316
  %v318 = vshll.u32 2131351028, %v309
  %v319 = vshrl.u32 2102212464, %v310
  %v320 = vor.u32 %v318, %v319
  %v321 = vshll.u32 2102212464, %v309
  %v322 = vshrl.u32 920167782, %v310
  %v323 = vor.u32 %v321, %v322
  %v324 = vshll.u32 920167782, %v309
  %v325 = vshrl.u32 1326507024, %v310
  %v326 = vor.u32 %v324, %v325
  %vm327 = vcmp.lt.s32.totalorder %v308, 1
  %vm328 = vcmp.lt.s32.totalorder %v308, 2
  %vm329 = vcmp.lt.s32.totalorder %v308, 3
  %vm330 = vcmp.lt.s32.totalorder %v308, 4
  %v331 = vsel %vm327, %v311, %v314
  %v332 = vsel %vm330, %v320, 2102212464
  %v333 = vsel %vm329, %v317, %v332
  %v334 = vsel %vm328, %v331, %v333
  %v335 = vsel %vm327, %v314, %v317
  %v336 = vsel %vm330, %v323, 920167782
  %v337 = vsel %vm329, %v320, %v336
  %v338 = vsel %vm328, %v335, %v337
  %v339 = vsel %vm327, %v317, %v320
  %v340 = vsel %vm330, %v326, 1326507024
  %v341 = vsel %vm329, %v323, %v340
  %v342 = vsel %vm328, %v339, %v341
  %v343 = vshll.u32 %v303, 8
  %v344 = vmul.u32.u64.compose %v343, %v342
  %v345 = vextract.low.u32 %v344
  %v346 = vextract.high.u32 %v344
  %v347 = vmul.u32.u64.compose %v343, %v338
  %v348 = vextract.low.u32 %v347
  %v349 = vextract.high.u32 %v347
  %v350 = vmul.u32 %v343, %v334
  %v351 = vadd.s32 %v346, %v348
  %vm352 = vc.u32 %v346, %v348
  %v353 = vadd.s32 %v349, 1
  %v354 = vsel %vm352, %v353, %v349
  %v355 = vadd.s32 %v350, %v354
  %v356 = vadd.s32 %v355, 536870912
  %v357 = vshrl.u32 %v356, 30
  %v358 = vshll.u32 %v357, 30
  %v359 = vsub.s32 %v355, %v358
  %vm360 = vcmp.lt.s32.totalorder %v359, 0
  %v361 = vsub.s32 0, %v359
  %v362 = vsel %vm360, %v361, %v359
  %v363 = vclz %v362
  %v364 = vsub.s32 %v363, 2
  %vm365 = vcmp.gt.s32.totalorder 0, %v364
  %v366 = vsel %vm365, 0, %v364
  %v367 = vsub.s32 32, %v366
  %v368 = vshll.u32 %v359, %v366
  %v369 = vshrl.u32 %v351, %v367
  %v370 = vor.u32 %v368, %v369
  %v371 = vsub.s32 4294967266, %v366
  %v372 = vadd.s32 %v371, 127
  %v373 = vshll.u32 %v372, 23
  %v374 = vor.u32 4788187, %v373
  %v375 = vand.u32 2147483647, %v374
  %v377 = vcvt.s32.f32 %v370
  %v378 = vmul.f32 %v377, %v375
  %v379 = vxor.u32 %v378, 2147483648
  %v380 = vsel %vm297, %v379, %v378
  %v381 = vsub.s32 4, %v357
  %v382 = vsel %vm297, %v381, %v357
  %v383 = vsel %vm296, %v190, %v380
  %v384 = vsel %vm296, 0, %v382
  %v385 = vcosq.f32.pop %v383
  %v386 = vsinq.f32.pop %v383
  %vm387 = vweird.f32 %v190
  %v388 = vadd.s32 %v384, 3
  %v389 = vand.u32 %v388, 3
  %vm390 = vcmp.lt.s32.totalorder %v389, 2
  %vm391 = vcmp.eq.s32.totalorder %v389, 0
  %v392 = vxor.u32 %v386, 2147483648
  %v393 = vsel %vm391, %v385, %v392
  %vm394 = vcmp.eq.s32.totalorder %v389, 2
  %v395 = vxor.u32 %v385, 2147483648
  %v396 = vsel %vm394, %v395, %v386
  %v397 = vsel %vm390, %v393, %v396
  %v398 = vsel %vm387, nan, %v397
  %v399 = vand.u32 2147483647, %v294
  %v400 = vand.u32 2147483647, %v398
  %v401 = vand.u32 2147483647, %v189
  %vm402 = vcmp.le.f32.partialorder %v401, 0.7853982
  %vm403 = vcmp.lt.s32.totalorder %v189, 0
  %v404 = vand.u32 %v189, 2139095040
  %v405 = vshrl.u32 %v404, 23
  %v406 = vsub.s32 %v405, 127
  %v407 = vand.u32 2147483647, %v189
  %v408 = vand.u32 %v407, 8388607
  %v409 = vor.u32 %v408, 8388608
  %v410 = vsub.s32 0, %v409
  %v411 = vadd.s32 %v406, 1
  %vm412 = vcmp.gt.s32.totalorder %v411, 0
  %v413 = vsel %vm412, %v411, 0
  %v414 = vshrl.u32 %v413, 5
  %v415 = vand.u32 %v413, 31
  %v416 = vsub.s32 32, %v415
  %v417 = vshrl.u32 683565275, %v416
  %v418 = vshll.u32 683565275, %v415
  %v419 = vshrl.u32 2475754826, %v416
  %v420 = vor.u32 %v418, %v419
  %v421 = vshll.u32 2475754826, %v415
  %v422 = vshrl.u32 2131351028, %v416
  %v423 = vor.u32 %v421, %v422
  %v424 = vshll.u32 2131351028, %v415
  %v425 = vshrl.u32 2102212464, %v416
  %v426 = vor.u32 %v424, %v425
  %v427 = vshll.u32 2102212464, %v415
  %v428 = vshrl.u32 920167782, %v416
  %v429 = vor.u32 %v427, %v428
  %v430 = vshll.u32 920167782, %v415
  %v431 = vshrl.u32 1326507024, %v416
  %v432 = vor.u32 %v430, %v431
  %vm433 = vcmp.lt.s32.totalorder %v414, 1
  %vm434 = vcmp.lt.s32.totalorder %v414, 2
  %vm435 = vcmp.lt.s32.totalorder %v414, 3
  %vm436 = vcmp.lt.s32.totalorder %v414, 4
  %v437 = vsel %vm433, %v417, %v420
  %v438 = vsel %vm436, %v426, 2102212464
  %v439 = vsel %vm435, %v423, %v438
  %v440 = vsel %vm434, %v437, %v439
  %v441 = vsel %vm433, %v420, %v423
  %v442 = vsel %vm436, %v429, 920167782
  %v443 = vsel %vm435, %v426, %v442
  %v444 = vsel %vm434, %v441, %v443
  %v445 = vsel %vm433, %v423, %v426
  %v446 = vsel %vm436, %v432, 1326507024
  %v447 = vsel %vm435, %v429, %v446
  %v448 = vsel %vm434, %v445, %v447
  %v449 = vshll.u32 %v409, 8
  %v450 = vmul.u32.u64.compose %v449, %v448
  %v451 = vextract.low.u32 %v450
  %v452 = vextract.high.u32 %v450
  %v453 = vmul.u32.u64.compose %v449, %v444
  %v454 = vextract.low.u32 %v453
  %v455 = vextract.high.u32 %v453
  %v456 = vmul.u32 %v449, %v440
  %v457 = vadd.s32 %v452, %v454
  %vm458 = vc.u32 %v452, %v454
  %v459 = vadd.s32 %v455, 1
  %v460 = vsel %vm458, %v459, %v455
  %v461 = vadd.s32 %v456, %v460
  %v462 = vadd.s32 %v461, 536870912
  %v463 = vshrl.u32 %v462, 30
  %v464 = vshll.u32 %v463, 30
  %v465 = vsub.s32 %v461, %v464
  %vm466 = vcmp.lt.s32.totalorder %v465, 0
  %v467 = vsub.s32 0, %v465
  %v468 = vsel %vm466, %v467, %v465
  %v469 = vclz %v468
  %v470 = vsub.s32 %v469, 2
  %vm471 = vcmp.gt.s32.totalorder 0, %v470
  %v472 = vsel %vm471, 0, %v470
  %v473 = vsub.s32 32, %v472
  %v474 = vshll.u32 %v465, %v472
  %v475 = vshrl.u32 %v457, %v473
  %v476 = vor.u32 %v474, %v475
  %v477 = vsub.s32 4294967266, %v472
  %v478 = vadd.s32 %v477, 127
  %v479 = vshll.u32 %v478, 23
  %v480 = vor.u32 4788187, %v479
  %v481 = vand.u32 2147483647, %v480
  %v483 = vcvt.s32.f32 %v476
  %v484 = vmul.f32 %v483, %v481
  %v485 = vxor.u32 %v484, 2147483648
  %v486 = vsel %vm403, %v485, %v484
  %v487 = vsub.s32 4, %v463
  %v488 = vsel %vm403, %v487, %v463
  %v489 = vsel %vm402, %v189, %v486
  %v490 = vsel %vm402, 0, %v488
  %v491 = vcosq.f32.pop %v489
  %v492 = vsinq.f32.pop %v489
  %vm493 = vweird.f32 %v189
  %v494 = vand.u32 %v490, 3
  %vm495 = vcmp.lt.s32.totalorder %v494, 2
  %vm496 = vcmp.eq.s32.totalorder %v494, 0
  %v497 = vxor.u32 %v492, 2147483648
  %v498 = vsel %vm496, %v491, %v497
  %vm499 = vcmp.eq.s32.totalorder %v494, 2
  %v500 = vxor.u32 %v491, 2147483648
  %v501 = vsel %vm499, %v500, %v492
  %v502 = vsel %vm495, %v498, %v501
  %v503 = vsel %vm493, nan, %v502
  %v504 = vand.u32 2147483647, %v190
  %vm505 = vcmp.le.f32.partialorder %v504, 0.7853982
  %vm506 = vcmp.lt.s32.totalorder %v190, 0
  %v507 = vand.u32 %v190, 2139095040
  %v508 = vshrl.u32 %v507, 23
  %v509 = vsub.s32 %v508, 127
  %v510 = vand.u32 2147483647, %v190
  %v511 = vand.u32 %v510, 8388607
  %v512 = vor.u32 %v511, 8388608
  %v513 = vsub.s32 0, %v512
  %v514 = vadd.s32 %v509, 1
  %vm515 = vcmp.gt.s32.totalorder %v514, 0
  %v516 = vsel %vm515, %v514, 0
  %v517 = vshrl.u32 %v516, 5
  %v518 = vand.u32 %v516, 31
  %v519 = vsub.s32 32, %v518
  %v520 = vshrl.u32 683565275, %v519
  %v521 = vshll.u32 683565275, %v518
  %v522 = vshrl.u32 2475754826, %v519
  %v523 = vor.u32 %v521, %v522
  %v524 = vshll.u32 2475754826, %v518
  %v525 = vshrl.u32 2131351028, %v519
  %v526 = vor.u32 %v524, %v525
  %v527 = vshll.u32 2131351028, %v518
  %v528 = vshrl.u32 2102212464, %v519
  %v529 = vor.u32 %v527, %v528
  %v530 = vshll.u32 2102212464, %v518
  %v531 = vshrl.u32 920167782, %v519
  %v532 = vor.u32 %v530, %v531
  %v533 = vshll.u32 920167782, %v518
  %v534 = vshrl.u32 1326507024, %v519
  %v535 = vor.u32 %v533, %v534
  %vm536 = vcmp.lt.s32.totalorder %v517, 1
  %vm537 = vcmp.lt.s32.totalorder %v517, 2
  %vm538 = vcmp.lt.s32.totalorder %v517, 3
  %vm539 = vcmp.lt.s32.totalorder %v517, 4
  %v540 = vsel %vm536, %v520, %v523
  %v541 = vsel %vm539, %v529, 2102212464
  %v542 = vsel %vm538, %v526, %v541
  %v543 = vsel %vm537, %v540, %v542
  %v544 = vsel %vm536, %v523, %v526
  %v545 = vsel %vm539, %v532, 920167782
  %v546 = vsel %vm538, %v529, %v545
  %v547 = vsel %vm537, %v544, %v546
  %v548 = vsel %vm536, %v526, %v529
  %v549 = vsel %vm539, %v535, 1326507024
  %v550 = vsel %vm538, %v532, %v549
  %v551 = vsel %vm537, %v548, %v550
  %v552 = vshll.u32 %v512, 8
  %v553 = vmul.u32.u64.compose %v552, %v551
  %v554 = vextract.low.u32 %v553
  %v555 = vextract.high.u32 %v553
  %v556 = vmul.u32.u64.compose %v552, %v547
  %v557 = vextract.low.u32 %v556
  %v558 = vextract.high.u32 %v556
  %v559 = vmul.u32 %v552, %v543
  %v560 = vadd.s32 %v555, %v557
  %vm561 = vc.u32 %v555, %v557
  %v562 = vadd.s32 %v558, 1
  %v563 = vsel %vm561, %v562, %v558
  %v564 = vadd.s32 %v559, %v563
  %v565 = vadd.s32 %v564, 536870912
  %v566 = vshrl.u32 %v565, 30
  %v567 = vshll.u32 %v566, 30
  %v568 = vsub.s32 %v564, %v567
  %vm569 = vcmp.lt.s32.totalorder %v568, 0
  %v570 = vsub.s32 0, %v568
  %v571 = vsel %vm569, %v570, %v568
  %v572 = vclz %v571
  %v573 = vsub.s32 %v572, 2
  %vm574 = vcmp.gt.s32.totalorder 0, %v573
  %v575 = vsel %vm574, 0, %v573
  %v576 = vsub.s32 32, %v575
  %v577 = vshll.u32 %v568, %v575
  %v578 = vshrl.u32 %v560, %v576
  %v579 = vor.u32 %v577, %v578
  %v580 = vsub.s32 4294967266, %v575
  %v581 = vadd.s32 %v580, 127
  %v582 = vshll.u32 %v581, 23
  %v583 = vor.u32 4788187, %v582
  %v584 = vand.u32 2147483647, %v583
  %v586 = vcvt.s32.f32 %v579
  %v587 = vmul.f32 %v586, %v584
  %v588 = vxor.u32 %v587, 2147483648
  %v589 = vsel %vm506, %v588, %v587
  %v590 = vsub.s32 4, %v566
  %v591 = vsel %vm506, %v590, %v566
  %v592 = vsel %vm505, %v190, %v589
  %v593 = vsel %vm505, 0, %v591
  %v594 = vcosq.f32.pop %v592
  %v595 = vsinq.f32.pop %v592
  %vm596 = vweird.f32 %v190
  %v597 = vand.u32 %v593, 3
  %vm598 = vcmp.lt.s32.totalorder %v597, 2
  %vm599 = vcmp.eq.s32.totalorder %v597, 0
  %v600 = vxor.u32 %v595, 2147483648
  %v601 = vsel %vm599, %v594, %v600
  %vm602 = vcmp.eq.s32.totalorder %v597, 2
  %v603 = vxor.u32 %v594, 2147483648
  %v604 = vsel %vm602, %v603, %v595
  %v605 = vsel %vm598, %v601, %v604
  %v606 = vsel %vm596, nan, %v605
  %v607 = vand.u32 2147483647, %v503
  %v608 = vand.u32 2147483647, %v606
  %v609 = vld [vmem:[%s3] sm:$0xff]
  %v610 = vmul.f32 %v125, %v87
  %v611 = vmul.f32 %v126, %v88
  %v612 = vadd.f32 %v610, %v611
  %v613 = vadd.f32 %v609, %v612
  %614 = vst [vmem:[%s3] sm:$0xff] %v613
  %v615 = vadd.f32 %v159, %v399
  %v616 = vadd.f32 %v160, %v400
  %s617 = scalar_lea.vmem %s3, 8
  %v618 = vld [vmem:[%s617] sm:$0xff]
  %v619 = vmul.f32 %v615, %v87
  %v620 = vmul.f32 %v616, %v88
  %v621 = vadd.f32 %v619, %v620
  %v622 = vadd.f32 %v618, %v621
  %623 = vst [vmem:[%s617] sm:$0xff] %v622
  %v624 = vadd.f32 %v187, %v607
  %v625 = vadd.f32 %v188, %v608
  %s626 = scalar_lea.vmem %s3, 16
  %v627 = vld [vmem:[%s626] sm:$0xff]
  %v628 = vmul.f32 %v624, %v87
  %v629 = vmul.f32 %v625, %v88
  %v630 = vadd.f32 %v628, %v629
  %v631 = vadd.f32 %v627, %v630
  %632 = vst [vmem:[%s626] sm:$0xff] %v631
  // Predicated region
  $region18: #{h2rbox_atss_loss.1} parent=0 // pred_check
    _
  $region19: #{h2rbox_atss_loss.1} parent=0 // pred_check_branch
    %634 = sbr.rel (0) target = $region21
  $region20: #{h2rbox_atss_loss.1} parent=0 // pred_region
    _
  $region21: #{h2rbox_atss_loss.1} parent=0 // pred_fallthru
    _
  // Predicated region
  $region22: #{h2rbox_atss_loss.1} parent=0 // pred_check
    _
  $region23: #{h2rbox_atss_loss.1} parent=0 // pred_check_branch
    %636 = sbr.rel (0) target = $region25
  $region24: #{h2rbox_atss_loss.1} parent=0 // pred_region
    _
  $region25: #{h2rbox_atss_loss.1} parent=0 // pred_fallthru
    _

</llo_original>
